<compile_context>
chip_gen: v6e
topology: v6e:2x2x1
jax: 0.10.0
libtpu: 0.0.40
codegen_flags: <defaults>
</compile_context>

<pallas_src>
import jax
import jax.numpy as jnp
from jax.experimental import pallas as pl
from jax.experimental.pallas import tpu as pltpu


def _classifier_sep_kernel(sep_ref, cls_ref, w_sep_ref, w_cls_ref, b_ref, out_ref):
    """One grid step == one tile of TB batch rows.

       sep_ref   : (TB, H) bf16 VMEM  gathered hidden_last[b, sep_ids[b], :]
       cls_ref   : (TB, H) bf16 VMEM  cls_outputs rows
       w_sep_ref : (H, Lp) bf16 VMEM  top half of W^T, zero-padded to Lp lanes
       w_cls_ref : (H, Lp) bf16 VMEM  bottom half of W^T, zero-padded
       b_ref     : (1, Lp) f32  VMEM  bias, zero-padded
       out_ref   : (TB, Lp) f32 VMEM  logits tile (padded)
    """
    out_ref[...] = (
        jnp.dot(sep_ref[...], w_sep_ref[...], preferred_element_type=jnp.float32)
        + jnp.dot(cls_ref[...], w_cls_ref[...], preferred_element_type=jnp.float32)
        + b_ref[...]
    ).astype(out_ref.dtype)


def classifier_sep_head(input_mask, hidden_last, cls_out, lin_w, lin_b,
                        *, tb_target=256, compute_dtype=jnp.bfloat16):
    """input_mask:  (B, S) int
       hidden_last: (B, S, H) f32, cls_out: (B, H) f32
       lin_w: (L, 2H) f32 (PyTorch [out, in] layout), lin_b: (L,) f32
       returns: (B, L) f32 logits
    """
    B, S, H = hidden_last.shape
    L = lin_w.shape[0]
    Lp = max(128, pl.cdiv(L, 128) * 128)              # lane-dense output width

    # sep_search index = sum(mask) per row.  Clamp to S-1: an all-ones mask
    # would otherwise index out of range (the PyTorch original would raise).
    sep_ids = jnp.minimum(input_mask.astype(jnp.int32).sum(axis=1),
                          S - 1).astype(jnp.int32)
    # Dense SEP gather in the wrapper -> (B, H) slab fed to the kernel.
    idx = jnp.broadcast_to(sep_ids[:, None, None], (B, 1, H))
    sep_rows = jnp.take_along_axis(hidden_last, idx, axis=1)[:, 0, :]

    # Batch tile: target 256 rows (fills MXU M on v6e/v7x, 2x128 on v5e),
    # clamped to the (sublane-padded) batch for small B.
    TB = min(tb_target, max(8, pl.cdiv(B, 8) * 8))
    Bp = pl.cdiv(B, TB) * TB
    n_tiles = Bp // TB

    itemsize = jnp.dtype(compute_dtype).itemsize
    sep_rows = jnp.pad(sep_rows, ((0, Bp - B), (0, 0))).astype(compute_dtype)
    cls_rows = jnp.pad(cls_out, ((0, Bp - B), (0, 0))).astype(compute_dtype)

    # Weight prep (in a real deployment: precompute once as model params
    # instead of per forward call).
    # TODO(synk): pad H to a multiple of 128 for real BERT sizes that are not.
    w_t = jnp.pad(lin_w.T, ((0, 0), (0, Lp - L)))      # (2H, Lp)
    w_sep = w_t[:H, :].astype(compute_dtype)           # multiplies sep_outputs
    w_cls = w_t[H:, :].astype(compute_dtype)           # multiplies cls_outputs
    bias = jnp.pad(lin_b, (0, Lp - L)).reshape(1, Lp).astype(jnp.float32)

    grid_spec = pltpu.PrefetchScalarGridSpec(
        num_scalar_prefetch=0,
        grid=(n_tiles,),
        in_specs=[
            pl.BlockSpec((TB, H), lambda i: (i, 0)),   # sep rows tile
            pl.BlockSpec((TB, H), lambda i: (i, 0)),   # cls rows tile
            # constant index_map -> weights/bias stay resident across steps
            pl.BlockSpec((H, Lp), lambda i: (0, 0)),
            pl.BlockSpec((H, Lp), lambda i: (0, 0)),
            pl.BlockSpec((1, Lp), lambda i: (0, 0)),
        ],
        out_specs=pl.BlockSpec((TB, Lp), lambda i: (i, 0)),
    )

    cost = pl.CostEstimate(
        flops=2 * Bp * (2 * H) * Lp,
        transcendentals=0,
        bytes_accessed=(2 * Bp * H * itemsize          # sep + cls slabs
                        + 2 * H * Lp * itemsize        # weight halves
                        + Lp * 4                       # bias
                        + Bp * Lp * 4),                # output
    )

    out_padded = pl.pallas_call(
        _classifier_sep_kernel,
        out_shape=jax.ShapeDtypeStruct((Bp, Lp), jnp.float32),
        grid_spec=grid_spec,
        compiler_params=pltpu.CompilerParams(
            dimension_semantics=("parallel",),         # batch tiles independent
            vmem_limit_bytes=32 * 1024 * 1024,         # safe on v7x's 64 MiB
        ),
        cost_estimate=cost,
    )(sep_rows, cls_rows, w_sep, w_cls, bias)

    return out_padded[:B, :L]


# ----------------------------------------------------------------------------
# Tiny deterministic plain-JAX BERT stub (the `bert` module passed to __init__).
# Returns (list_of_hidden_states, cls_pooled_output), mimicking
# output_all_encoded_layers=True.
# ----------------------------------------------------------------------------
def tiny_bert(params, input_ids, segment_ids, input_mask):
    del input_mask  # the stub encoder ignores the mask
    S = input_ids.shape[1]
    h = (params["tok_emb"][input_ids]
         + params["seg_emb"][segment_ids]
         + params["pos_emb"][None, :S, :])
    hiddens = []
    for (w, b) in params["layers"]:
        h = jnp.tanh(h @ w + b)
        hiddens.append(h)
    cls = jnp.tanh(hiddens[-1][:, 0, :] @ params["pool_w"] + params["pool_b"])
    return hiddens, cls


def classifier_sep_model_forward(bert_params, lin_w, lin_b,
                                 input_ids, segment_ids, input_mask):
    hiddens_outputs, cls_outputs = tiny_bert(bert_params, input_ids,
                                             segment_ids, input_mask)
    return classifier_sep_head(input_mask, hiddens_outputs[-1], cls_outputs,
                               lin_w, lin_b)


if __name__ == "__main__":
    B, S, H, L = 2, 8, 32, 26       # batch, seq, bert_output_size, num_labels
    VOCAB, N_LAYERS = 50, 2

    key = jax.random.PRNGKey(0)
    ks = jax.random.split(key, 8 + 2 * N_LAYERS)

    bert_params = {
        "tok_emb": 0.02 * jax.random.normal(ks[0], (VOCAB, H), jnp.float32),
        "seg_emb": 0.02 * jax.random.normal(ks[1], (2, H), jnp.float32),
        "pos_emb": 0.02 * jax.random.normal(ks[2], (S, H), jnp.float32),
        "pool_w": 0.02 * jax.random.normal(ks[3], (H, H), jnp.float32),
        "pool_b": 0.02 * jax.random.normal(ks[4], (H,), jnp.float32),
        "layers": [
            (0.02 * jax.random.normal(ks[5 + 2 * i], (H, H), jnp.float32),
             0.02 * jax.random.normal(ks[6 + 2 * i], (H,), jnp.float32))
            for i in range(N_LAYERS)
        ],
    }
    lin_w = 0.02 * jax.random.normal(ks[-2], (L, 2 * H), jnp.float32)  # PyTorch [out, in]
    lin_b = 0.02 * jax.random.normal(ks[-1], (L,), jnp.float32)

    input_ids = jax.random.randint(jax.random.PRNGKey(1), (B, S), 0, VOCAB)
    segment_ids = jnp.zeros((B, S), jnp.int32).at[:, S // 2:].set(1)
    # mask sums (= SEP indices per the PyTorch code) stay < S
    input_mask = jnp.array([[1, 1, 1, 1, 1, 0, 0, 0],
                            [1, 1, 1, 0, 0, 0, 0, 0]], jnp.int32)

    pred = classifier_sep_model_forward(bert_params, lin_w, lin_b,
                                        input_ids, segment_ids, input_mask)
    pred = jax.block_until_ready(pred)

    # plain-JAX f32 reference of the same forward pass for a sanity check
    hiddens, cls = tiny_bert(bert_params, input_ids, segment_ids, input_mask)
    sep_ids_ref = input_mask.sum(axis=1)
    sep_outputs = hiddens[-1][jnp.arange(B), sep_ids_ref, :]
    ref = jnp.concatenate([sep_outputs, cls], axis=1) @ lin_w.T + lin_b

    assert pred.shape == (B, L)
    # bf16 compute path vs f32 reference -> relaxed tolerance
    assert jnp.allclose(pred, ref, atol=5e-3, rtol=5e-2)
    print("KERNEL_OK")
</pallas_src>

<mosaic_0001>
module attributes {stable_mosaic.version = 11 : i64} {
  func.func @_classifier_sep_kernel(%arg0: i32, %arg1: memref<8x32xbf16, #tpu.memory_space<vmem>>, %arg2: memref<8x32xbf16, #tpu.memory_space<vmem>>, %arg3: memref<32x128xbf16, #tpu.memory_space<vmem>>, %arg4: memref<32x128xbf16, #tpu.memory_space<vmem>>, %arg5: memref<1x128xf32, #tpu.memory_space<vmem>>, %arg6: memref<8x128xf32, #tpu.memory_space<vmem>>) attributes {dimension_semantics = [#tpu.dimension_semantics<parallel>], iteration_bounds = array<i64: 1>, scalar_prefetch = 0 : i64, scratch_operands = 0 : i64, tpu.core_type = #tpu.core_type<tc>, window_params = [{transform_indices = @transform_0, window_bounds = array<i64: 8, 32>}, {transform_indices = @transform_1, window_bounds = array<i64: 8, 32>}, {pipeline_mode = #tpu.pipeline_mode<synchronous>, transform_indices = @transform_2, window_bounds = array<i64: 32, 128>}, {pipeline_mode = #tpu.pipeline_mode<synchronous>, transform_indices = @transform_3, window_bounds = array<i64: 32, 128>}, {pipeline_mode = #tpu.pipeline_mode<synchronous>, transform_indices = @transform_4, window_bounds = array<i64: 1, 128>}, {transform_indices = @transform_5, window_bounds = array<i64: 8, 128>}]} {
    %c0 = arith.constant 0 : index
    %c0_0 = arith.constant 0 : index
    %0 = vector.load %arg1[%c0, %c0_0] : memref<8x32xbf16, #tpu.memory_space<vmem>>, vector<8x32xbf16>
    %c0_1 = arith.constant 0 : index
    %c0_2 = arith.constant 0 : index
    %1 = vector.load %arg3[%c0_1, %c0_2] : memref<32x128xbf16, #tpu.memory_space<vmem>>, vector<32x128xbf16>
    %cst = arith.constant dense<0.000000e+00> : vector<8x128xf32>
    %2 = tpu.matmul %0, %1, %cst {dimension_numbers = #tpu.dot_dimension_numbers<[1], [0], [0], [1], [0, 0, 1, 1], [], []>} : vector<8x32xbf16>, vector<32x128xbf16>, vector<8x128xf32> -> vector<8x128xf32>
    %c0_3 = arith.constant 0 : index
    %c0_4 = arith.constant 0 : index
    %3 = vector.load %arg2[%c0_3, %c0_4] : memref<8x32xbf16, #tpu.memory_space<vmem>>, vector<8x32xbf16>
    %c0_5 = arith.constant 0 : index
    %c0_6 = arith.constant 0 : index
    %4 = vector.load %arg4[%c0_5, %c0_6] : memref<32x128xbf16, #tpu.memory_space<vmem>>, vector<32x128xbf16>
    %cst_7 = arith.constant dense<0.000000e+00> : vector<8x128xf32>
    %5 = tpu.matmul %3, %4, %cst_7 {dimension_numbers = #tpu.dot_dimension_numbers<[1], [0], [0], [1], [0, 0, 1, 1], [], []>} : vector<8x32xbf16>, vector<32x128xbf16>, vector<8x128xf32> -> vector<8x128xf32>
    %6 = arith.addf %2, %5 : vector<8x128xf32>
    %c0_8 = arith.constant 0 : index
    %c0_9 = arith.constant 0 : index
    %7 = vector.load %arg5[%c0_8, %c0_9] : memref<1x128xf32, #tpu.memory_space<vmem>>, vector<1x128xf32>
    %8 = vector.broadcast %7 : vector<1x128xf32> to vector<8x128xf32>
    %9 = arith.addf %6, %8 : vector<8x128xf32>
    %c0_10 = arith.constant 0 : index
    %c0_11 = arith.constant 0 : index
    %10 = vector.load %arg6[%c0_10, %c0_11] : memref<8x128xf32, #tpu.memory_space<vmem>>, vector<8x128xf32>
    tpu.vector_store %arg6[%c0_10, %c0_11], %9 {strides = array<i32>} : memref<8x128xf32, #tpu.memory_space<vmem>>, vector<8x128xf32>,
    return
  }
  func.func @transform_0(%arg0: i32) -> (i32, i32) {
    %c0_i32 = arith.constant 0 : i32
    %c0_i32_0 = arith.constant 0 : i32
    return %arg0, %c0_i32 : i32, i32
  }
  func.func @transform_1(%arg0: i32) -> (i32, i32) {
    %c0_i32 = arith.constant 0 : i32
    %c0_i32_0 = arith.constant 0 : i32
    return %arg0, %c0_i32 : i32, i32
  }
  func.func @transform_2(%arg0: i32) -> (i32, i32) {
    %c0_i32 = arith.constant 0 : i32
    %c0_i32_0 = arith.constant 0 : i32
    %c0_i32_1 = arith.constant 0 : i32
    return %c0_i32, %c0_i32_0 : i32, i32
  }
  func.func @transform_3(%arg0: i32) -> (i32, i32) {
    %c0_i32 = arith.constant 0 : i32
    %c0_i32_0 = arith.constant 0 : i32
    %c0_i32_1 = arith.constant 0 : i32
    return %c0_i32, %c0_i32_0 : i32, i32
  }
  func.func @transform_4(%arg0: i32) -> (i32, i32) {
    %c0_i32 = arith.constant 0 : i32
    %c0_i32_0 = arith.constant 0 : i32
    %c0_i32_1 = arith.constant 0 : i32
    return %c0_i32, %c0_i32_0 : i32, i32
  }
  func.func @transform_5(%arg0: i32) -> (i32, i32) {
    %c0_i32 = arith.constant 0 : i32
    %c0_i32_0 = arith.constant 0 : i32
    return %arg0, %c0_i32 : i32, i32
  }
}

</mosaic_0001>

<llo_original>
// kernel: tpu_custom_call.1
$region0: #{tpu_custom_call.1}
  #allocation0 [shape = 'u32[]', space=smem, size = 0x4, offset = 0x4, fixed_abs, tag = 'smem constant byte address 0x4 - core index']
  #allocation1 [shape = 'u32[144,128]{1,0:T(1,128)}', space=vmem, size = 0x12000, scoped, tag = 'internal scratch']
  %s0 = inlined_call_operand.hbm [shape: bf16[8,32], index: 0, kind: input, shape index: {}]
  %s1 = inlined_call_operand.hbm [shape: bf16[8,32], index: 1, kind: input, shape index: {}]
  %s2 = inlined_call_operand.hbm [shape: bf16[32,128], index: 2, kind: input, shape index: {}]
  %s3 = inlined_call_operand.hbm [shape: bf16[32,128], index: 3, kind: input, shape index: {}]
  %s4 = inlined_call_operand.vmem [shape: f32[1,128], index: 4, kind: input, shape index: {}]
  %s5 = inlined_call_operand.hbm [shape: f32[8,128], index: 5, kind: output, shape index: {}]
  %s6 = sld [smem:[#allocation0]]
  $region46: #{tpu_custom_call.1} parent=0
    _
  %s8 = ssub.s32 1, %s6
  %s9 = scalar_select 0, %s8, %s6
  $region1: #{tpu_custom_call.1} parent=0
    #allocation2 [shape = 'u8[2048]{0}', space=vmem, size = 0x800, scoped, tag = 'input window, operand 0, single buffered']
    #allocation3 [shape = 's32[1]{0}', space=sflag, size = 0x4, scoped, tag = 'scoped memory for tpu_custom_call.1']
    #allocation4 [shape = 's32[1]{0}', space=sflag, size = 0x4, scoped, tag = 'scoped memory for tpu_custom_call.1']
    #allocation5 [shape = 'u8[2048]{0}', space=vmem, size = 0x800, scoped, tag = 'input window, operand 1, single buffered']
    #allocation6 [shape = 's32[1]{0}', space=sflag, size = 0x4, scoped, tag = 'scoped memory for tpu_custom_call.1']
    #allocation7 [shape = 'u8[8192]{0}', space=vmem, size = 0x2000, scoped, tag = 'input window, operand 2, single buffered']
    #allocation8 [shape = 'u8[8192]{0}', space=vmem, size = 0x2000, scoped, tag = 'input window, operand 3, single buffered']
    #allocation9 [shape = 's32[1]{0}', space=sflag, size = 0x4, scoped, tag = 'scoped memory for tpu_custom_call.1']
    #allocation10 [shape = 'u8[4096]{0}', space=vmem, size = 0x1000, scoped, tag = 'output window, operand 0, single buffered']
    %10 = vsyncpa [#allocation3], 0
    %11 = vsyncpa [#allocation6], 0
    %12 = vsyncpa [#allocation9], 0
    %13 = vsyncpa [#allocation4], 0
    // Predicated region
    $region2: #{tpu_custom_call.1} parent=1 // pred_check
      _
    $region3: #{tpu_custom_call.1} parent=1 // pred_check_branch
      %15 = sbr.rel (0) target = $region5
    $region4: #{tpu_custom_call.1} parent=1 // pred_region
      %s17 = ssub.s32 64, 64
      %18 = vsyncadd [#allocation3], %s17
      %s20 = sshll.u32 [#allocation2], 4
      %s21 = int_to_ptr.vmem [resolvable:$true] %s20
      %23 = dma.hbm_to_vmem [thread:$0]  %s0, 64, %s21, [#allocation3]
    $region5: #{tpu_custom_call.1} parent=1 // pred_fallthru
      _
    // Predicated region
    $region6: #{tpu_custom_call.1} parent=1 // pred_check
      _
    $region7: #{tpu_custom_call.1} parent=1 // pred_check_branch
      %25 = sbr.rel (0) target = $region9
    $region8: #{tpu_custom_call.1} parent=1 // pred_region
      %s27 = ssub.s32 64, 64
      %28 = vsyncadd [#allocation6], %s27
      %s30 = sshll.u32 [#allocation5], 4
      %s31 = int_to_ptr.vmem [resolvable:$true] %s30
      %33 = dma.hbm_to_vmem [thread:$0]  %s1, 64, %s31, [#allocation6]
    $region9: #{tpu_custom_call.1} parent=1 // pred_fallthru
      _
    // Predicated region
    $region10: #{tpu_custom_call.1} parent=1 // pred_check
      _
    $region11: #{tpu_custom_call.1} parent=1 // pred_check_branch
      %35 = sbr.rel (0) target = $region13
    $region12: #{tpu_custom_call.1} parent=1 // pred_region
      %s37 = ssub.s32 256, 256
      %38 = vsyncadd [#allocation6], %s37
      %s39 = sshll.u32 [#allocation7], 4
      %s40 = int_to_ptr.vmem [resolvable:$true] %s39
      %45 = dma.hbm_to_vmem [thread:$0]  %s2, 256, %s40, [#allocation6], 64, 64, 4
    $region13: #{tpu_custom_call.1} parent=1 // pred_fallthru
      _
    // Predicated region
    $region14: #{tpu_custom_call.1} parent=1 // pred_check
      _
    $region15: #{tpu_custom_call.1} parent=1 // pred_check_branch
      %47 = sbr.rel (0) target = $region17
    $region16: #{tpu_custom_call.1} parent=1 // pred_region
      %s49 = ssub.s32 256, 256
      %50 = vsyncadd [#allocation9], %s49
      %s51 = sshll.u32 [#allocation8], 4
      %s52 = int_to_ptr.vmem [resolvable:$true] %s51
      %57 = dma.hbm_to_vmem [thread:$0]  %s3, 256, %s52, [#allocation9], 64, 64, 4
    $region17: #{tpu_custom_call.1} parent=1 // pred_fallthru
      _
    // Predicated region
    $region18: #{tpu_custom_call.1} parent=1 // pred_check
      _
    $region19: #{tpu_custom_call.1} parent=1 // pred_check_branch
      %59 = sbr.rel (0) target = $region21
    $region20: #{tpu_custom_call.1} parent=1 // pred_region
      _
    $region21: #{tpu_custom_call.1} parent=1 // pred_fallthru
      _
    // Predicated region
    $region22: #{tpu_custom_call.1} parent=1 // pred_check
      _
    $region23: #{tpu_custom_call.1} parent=1 // pred_check_branch
      %61 = sbr.rel (0) target = $region25
    $region24: #{tpu_custom_call.1} parent=1 // pred_region
      %62 = dma.done [#allocation3], 64
    $region25: #{tpu_custom_call.1} parent=1 // pred_fallthru
      _
    // Predicated region
    $region26: #{tpu_custom_call.1} parent=1 // pred_check
      _
    $region27: #{tpu_custom_call.1} parent=1 // pred_check_branch
      %64 = sbr.rel (0) target = $region29
    $region28: #{tpu_custom_call.1} parent=1 // pred_region
      %65 = dma.done [#allocation6], 64
    $region29: #{tpu_custom_call.1} parent=1 // pred_fallthru
      _
    // Predicated region
    $region30: #{tpu_custom_call.1} parent=1 // pred_check
      _
    $region31: #{tpu_custom_call.1} parent=1 // pred_check_branch
      %67 = sbr.rel (0) target = $region33
    $region32: #{tpu_custom_call.1} parent=1 // pred_region
      %68 = dma.done [#allocation6], 256
    $region33: #{tpu_custom_call.1} parent=1 // pred_fallthru
      _
    // Predicated region
    $region34: #{tpu_custom_call.1} parent=1 // pred_check
      _
    $region35: #{tpu_custom_call.1} parent=1 // pred_check_branch
      %70 = sbr.rel (0) target = $region37
    $region36: #{tpu_custom_call.1} parent=1 // pred_region
      %71 = dma.done [#allocation9], 256
    $region37: #{tpu_custom_call.1} parent=1 // pred_fallthru
      _
    %v73 = vld [vmem:[#allocation2] sm:$0xf]
    %v74 = vld [vmem:[#allocation7] sm:$0xf]
    %v75 = vld [vmem:[#allocation7 + $0x4] sm:$0xf]
    %v76 = vld [vmem:[#allocation7 + $0x8] sm:$0xf]
    %v77 = vld [vmem:[#allocation7 + $0xc] sm:$0xf]
    %v78 = vld [vmem:[#allocation5] sm:$0xf]
    %v79 = vld [vmem:[#allocation8] sm:$0xf]
    %v80 = vld [vmem:[#allocation8 + $0x4] sm:$0xf]
    %v81 = vld [vmem:[#allocation8 + $0x8] sm:$0xf]
    %v82 = vld [vmem:[#allocation8 + $0xc] sm:$0xf]
    %v87 = vunpack.c.l.b16 %v79
    %v88 = vunpack.c.l.b16 %v80
    %v89 = vunpack.c.l.b16 %v81
    %v90 = vunpack.c.l.b16 %v82
    %v91 = vpack.c.b16 %v88, %v87
    %v92 = vpack.c.b16 %v90, %v89
    %vm95 = vcmask 261120
    %v97 = vsel %vm95, %v78, 0
    %99 = vmatprep.subr.bf16.mxu0 0
    %100 = vmatpush1.bf16.msra.mxu0 0
    %101 = vmatprep.subr.bf16.mxu0 0
    %102 = vmatpush1.bf16.msra.mxu0 0
    %103 = vmatprep.subr.bf16.mxu0 0
    %104 = vmatpush1.bf16.msra.mxu0 0
    %105 = vmatprep.subr.bf16.mxu0 0
    %106 = vmatpush1.bf16.msra.mxu0 0
    %107 = vmatprep.subr.bf16.mxu0 0
    %108 = vmatpush1.bf16.msra.mxu0 0
    %109 = vmatprep.subr.bf16.mxu0 0
    %110 = vmatpush1.bf16.msra.mxu0 0
    %111 = vmatprep.subr.bf16.mxu0 0
    %112 = vmatpush1.bf16.msra.mxu0 %v92
    %113 = vmatprep.subr.bf16.mxu0 0
    %114 = vmatpush1.bf16.msra.mxu0 %v91
    %115 = vmatprep.subr.bf16.mxu0 0
    %116 = vmatpush2.bf16.msra.mxu0 0
    %117 = vmatprep.subr.bf16.mxu0 0
    %118 = vmatpush2.bf16.msra.mxu0 0
    %119 = vmatprep.subr.bf16.mxu0 0
    %120 = vmatpush2.bf16.msra.mxu0 0
    %121 = vmatprep.subr.bf16.mxu0 0
    %122 = vmatpush2.bf16.msra.mxu0 0
    %123 = vmatprep.subr.bf16.mxu0 0
    %124 = vmatpush2.bf16.msra.mxu0 0
    %125 = vmatprep.subr.bf16.mxu0 0
    %126 = vmatpush2.bf16.msra.mxu0 0
    %127 = vmatprep.subr.bf16.mxu0 0
    %128 = vmatpush2.bf16.msra.mxu0 0
    %129 = vmatprep.subr.bf16.mxu0 0
    %130 = vmatpush2.bf16.msra.mxu0 0
    %131 = vmatprep.mubr.bf16.mxu0 0
    %132 = vmatmul.mubr.bf16.gmra.mxu0 %v97
    %v133 = vpop.f32.mrf.mxu0
    %v134 = vadd.f32 0.0, %v133
    %v135 = vpop.f32.mrf.mxu0
    %v136 = vpop.f32.mrf.mxu0
    %v137 = vpop.f32.mrf.mxu0
    %138 = vdwg.mxu0
    %v143 = vunpack.c.l.b16 %v74
    %v144 = vunpack.c.l.b16 %v75
    %v145 = vunpack.c.l.b16 %v76
    %v146 = vunpack.c.l.b16 %v77
    %v147 = vpack.c.b16 %v144, %v143
    %v148 = vpack.c.b16 %v146, %v145
    %v152 = vsel %vm95, %v73, 0
    %154 = vmatprep.subr.bf16.mxu0 0
    %155 = vmatpush1.bf16.msra.mxu0 0
    %156 = vmatprep.subr.bf16.mxu0 0
    %157 = vmatpush1.bf16.msra.mxu0 0
    %158 = vmatprep.subr.bf16.mxu0 0
    %159 = vmatpush1.bf16.msra.mxu0 0
    %160 = vmatprep.subr.bf16.mxu0 0
    %161 = vmatpush1.bf16.msra.mxu0 0
    %162 = vmatprep.subr.bf16.mxu0 0
    %163 = vmatpush1.bf16.msra.mxu0 0
    %164 = vmatprep.subr.bf16.mxu0 0
    %165 = vmatpush1.bf16.msra.mxu0 0
    %166 = vmatprep.subr.bf16.mxu0 0
    %167 = vmatpush1.bf16.msra.mxu0 %v148
    %168 = vmatprep.subr.bf16.mxu0 0
    %169 = vmatpush1.bf16.msra.mxu0 %v147
    %170 = vmatprep.subr.bf16.mxu0 0
    %171 = vmatpush2.bf16.msra.mxu0 0
    %172 = vmatprep.subr.bf16.mxu0 0
    %173 = vmatpush2.bf16.msra.mxu0 0
    %174 = vmatprep.subr.bf16.mxu0 0
    %175 = vmatpush2.bf16.msra.mxu0 0
    %176 = vmatprep.subr.bf16.mxu0 0
    %177 = vmatpush2.bf16.msra.mxu0 0
    %178 = vmatprep.subr.bf16.mxu0 0
    %179 = vmatpush2.bf16.msra.mxu0 0
    %180 = vmatprep.subr.bf16.mxu0 0
    %181 = vmatpush2.bf16.msra.mxu0 0
    %182 = vmatprep.subr.bf16.mxu0 0
    %183 = vmatpush2.bf16.msra.mxu0 0
    %184 = vmatprep.subr.bf16.mxu0 0
    %185 = vmatpush2.bf16.msra.mxu0 0
    %186 = vmatprep.mubr.bf16.mxu0 0
    %187 = vmatmul.mubr.bf16.gmra.mxu0 %v152
    %v188 = vpop.f32.mrf.mxu0
    %v189 = vadd.f32 %v134, %v188
    %v190 = vpop.f32.mrf.mxu0
    %v191 = vpop.f32.mrf.mxu0
    %v192 = vpop.f32.mrf.mxu0
    %193 = vdwg.mxu0
    %v194 = vld [vmem:[%s4] sm:$0x1]
    %v196 = vlaneseq
    %v197 = vshrl.u32 %v196, 7
    %v198 = vsub.s32 0, %v197
    %v199 = vrot.slane %v194, %v198
    %v201 = vadd.f32 %v189, %v199
    %202 = vst [vmem:[#allocation10] sm:$0xff] %v201
    // Predicated region
    $region38: #{tpu_custom_call.1} parent=1 // pred_check
      _
    $region39: #{tpu_custom_call.1} parent=1 // pred_check_branch
      %204 = sbr.rel (0) target = $region41
    $region40: #{tpu_custom_call.1} parent=1 // pred_region
      %s206 = ssub.s32 128, 128
      %207 = vsyncadd [#allocation4], %s206
      %s209 = sshll.u32 [#allocation10], 4
      %s210 = int_to_ptr.vmem [resolvable:$true] %s209
      %212 = dma.vmem_to_hbm [thread:$0]  %s210, 128, %s5, [#allocation4]
    $region41: #{tpu_custom_call.1} parent=1 // pred_fallthru
      _
    // Predicated region
    $region42: #{tpu_custom_call.1} parent=1 // pred_check
      _
    $region43: #{tpu_custom_call.1} parent=1 // pred_check_branch
      %214 = sbr.rel (0) target = $region45
    $region44: #{tpu_custom_call.1} parent=1 // pred_region
      %215 = dma.done [#allocation4], 128
    $region45: #{tpu_custom_call.1} parent=1 // pred_fallthru
      _
    %216 = vsyncpa [#allocation3], 1
    %217 = vsyncpa [#allocation6], 1
    %218 = vsyncpa [#allocation9], 1
    %219 = vsyncpa [#allocation4], 1

</llo_original>
